<compile_context>
chip_gen: v7x
topology: tpu7x:2x2x1
jax: 0.10.0
libtpu: 0.0.40
codegen_flags: <defaults>
</compile_context>

<pallas_src>
import jax
import jax.numpy as jnp
from jax.experimental import pallas as pl
from jax.experimental.pallas import tpu as pltpu

INPUT_DIM = 1
HIDDEN = 128
OUTPUT_DIM = 2          # len(ACTION_SPACE)
OUT_PAD = 128           # fc3 MXU width (padded); only OUTPUT_DIM lanes are stored


def _round_up(x, m):
    return ((x + m - 1) // m) * m


def dqn_kernel(x_ref, w1_ref, b1_ref, w2_ref, b2_ref, w3_ref, b3_ref, o_ref):
    # fc1 + relu: K = 1, pure VPU broadcast / outer product:
    #   [TM, 1] * [1, 128] + [1, 128] -> [TM, 128]; cast to bf16 fused here.
    h1 = jnp.maximum(x_ref[...] * w1_ref[...] + b1_ref[...], 0.0)
    h1 = h1.astype(jnp.bfloat16)

    # fc2 + relu: bf16 x bf16 MXU matmul, f32 accumulation; bf16 cast fused.
    h2 = jnp.dot(h1, w2_ref[...], preferred_element_type=jnp.float32)
    h2 = jnp.maximum(h2 + b2_ref[...], 0.0).astype(jnp.bfloat16)

    # fc3: run at N=OUT_PAD on the MXU (same cost as N=2), add padded bias,
    # then narrow to OUTPUT_DIM before the HBM store (no padded writeback).
    out = jnp.dot(h2, w3_ref[...], preferred_element_type=jnp.float32) + b3_ref[...]
    o_ref[...] = out[:, :OUTPUT_DIM].astype(o_ref.dtype)


def dqn_forward(x, params, *, tm=2048):
    """x: [B, INPUT_DIM] float32 -> [B, OUTPUT_DIM] float32."""
    w1, b1, w2, b2, w3p, b3p = params  # w2/w3p are bf16; w3p/b3p lane-padded to OUT_PAD
    B = x.shape[0]

    # Batch tile: multiple of 8 sublanes; ensure >=2 grid steps when the batch
    # is big enough so v7x's two TensorCores both get work (parallel axis).
    b_al = _round_up(B, 8)
    tm = min(tm, max(8, _round_up(pl.cdiv(b_al, 2), 8)))
    b_pad = _round_up(B, tm)
    if b_pad != B:
        x = jnp.pad(x, ((0, b_pad - B), (0, 0)))

    grid = (b_pad // tm,)

    # Weights: full-array blocks, index_map always (0,0) -> resident in VMEM.
    resident = lambda shape: pl.BlockSpec(shape, lambda i: (0, 0))

    out_padded = pl.pallas_call(
        dqn_kernel,
        out_shape=jax.ShapeDtypeStruct((b_pad, OUTPUT_DIM), jnp.float32),
        grid_spec=pltpu.PrefetchScalarGridSpec(
            num_scalar_prefetch=0,
            grid=grid,
            in_specs=[
                pl.BlockSpec((tm, INPUT_DIM), lambda i: (i, 0)),   # x tile (lane-sparse, OK at K=1)
                resident((INPUT_DIM, HIDDEN)),                      # w1 (f32, VPU)
                resident((1, HIDDEN)),                              # b1 (f32)
                resident((HIDDEN, HIDDEN)),                         # w2 (bf16)
                resident((1, HIDDEN)),                              # b2 (f32)
                resident((HIDDEN, OUT_PAD)),                        # w3 (bf16, padded)
                resident((1, OUT_PAD)),                             # b3 (f32, padded)
            ],
            out_specs=pl.BlockSpec((tm, OUTPUT_DIM), lambda i: (i, 0)),
        ),
        compiler_params=pltpu.CompilerParams(
            dimension_semantics=("parallel",),  # v7x: shard batch across 2 TCs
        ),
    )(x, w1, b1, w2, b2, w3p, b3p)

    return out_padded[:B]


def init_params(key):
    """Deterministic init mimicking nn.Linear default: U(-1/sqrt(fan_in), 1/sqrt(fan_in))."""
    ks = jax.random.split(key, 6)

    def linear(kw, kb, fan_in, fan_out):
        bound = 1.0 / jnp.sqrt(float(fan_in))
        w = jax.random.uniform(kw, (fan_in, fan_out), jnp.float32, -bound, bound)
        b = jax.random.uniform(kb, (1, fan_out), jnp.float32, -bound, bound)
        return w, b

    w1, b1 = linear(ks[0], ks[1], INPUT_DIM, HIDDEN)
    w2, b2 = linear(ks[2], ks[3], HIDDEN, HIDDEN)
    w3, b3 = linear(ks[4], ks[5], HIDDEN, OUTPUT_DIM)

    # MXU operands in bf16; fc3 zero-padded to OUT_PAD lanes for the MXU.
    w2 = w2.astype(jnp.bfloat16)
    w3p = jnp.zeros((HIDDEN, OUT_PAD), jnp.float32).at[:, :OUTPUT_DIM].set(w3)
    w3p = w3p.astype(jnp.bfloat16)
    b3p = jnp.zeros((1, OUT_PAD), jnp.float32).at[:, :OUTPUT_DIM].set(b3)
    return (w1, b1, w2, b2, w3p, b3p)


def dqn_reference(x, params):
    """Pure-JAX reference following the same bf16-operand / f32-accumulate math."""
    w1, b1, w2, b2, w3p, b3p = params
    h1 = jnp.maximum(x @ w1 + b1, 0.0).astype(jnp.bfloat16)
    h2 = jnp.dot(h1, w2, preferred_element_type=jnp.float32)
    h2 = jnp.maximum(h2 + b2, 0.0).astype(jnp.bfloat16)
    out = jnp.dot(h2, w3p, preferred_element_type=jnp.float32) + b3p
    return out[:, :OUTPUT_DIM]


if __name__ == "__main__":
    key = jax.random.PRNGKey(0)
    kp, kx = jax.random.split(key)
    params = init_params(kp)

    B = 8
    x = jax.random.normal(kx, (B, INPUT_DIM), jnp.float32)

    out = dqn_forward(x, params)
    out = jax.block_until_ready(out)

    ref = dqn_reference(x, params)
    assert out.shape == (B, OUTPUT_DIM)
    assert jnp.allclose(out, ref, atol=1e-2, rtol=1e-2)

    # Larger, non-multiple batch to exercise the multi-step (dual-TC) grid path.
    B2 = 1000
    x2 = jax.random.normal(jax.random.PRNGKey(1), (B2, INPUT_DIM), jnp.float32)
    out2 = jax.block_until_ready(dqn_forward(x2, params))
    ref2 = dqn_reference(x2, params)
    assert out2.shape == (B2, OUTPUT_DIM)
    assert jnp.allclose(out2, ref2, atol=1e-2, rtol=1e-2)

    print("KERNEL_OK")
</pallas_src>

<mosaic_0001>
module attributes {stable_mosaic.version = 11 : i64} {
  func.func @dqn_kernel(%arg0: i32, %arg1: memref<8x1xf32, #tpu.memory_space<vmem>>, %arg2: memref<1x128xf32, #tpu.memory_space<vmem>>, %arg3: memref<1x128xf32, #tpu.memory_space<vmem>>, %arg4: memref<128x128xbf16, #tpu.memory_space<vmem>>, %arg5: memref<1x128xf32, #tpu.memory_space<vmem>>, %arg6: memref<128x128xbf16, #tpu.memory_space<vmem>>, %arg7: memref<1x128xf32, #tpu.memory_space<vmem>>, %arg8: memref<8x2xf32, #tpu.memory_space<vmem>>) attributes {dimension_semantics = [#tpu.dimension_semantics<parallel>], iteration_bounds = array<i64: 1>, scalar_prefetch = 0 : i64, scratch_operands = 0 : i64, tpu.core_type = #tpu.core_type<tc>, window_params = [{transform_indices = @transform_0, window_bounds = array<i64: 8, 1>}, {pipeline_mode = #tpu.pipeline_mode<synchronous>, transform_indices = @transform_1, window_bounds = array<i64: 1, 128>}, {pipeline_mode = #tpu.pipeline_mode<synchronous>, transform_indices = @transform_2, window_bounds = array<i64: 1, 128>}, {pipeline_mode = #tpu.pipeline_mode<synchronous>, transform_indices = @transform_3, window_bounds = array<i64: 128, 128>}, {pipeline_mode = #tpu.pipeline_mode<synchronous>, transform_indices = @transform_4, window_bounds = array<i64: 1, 128>}, {pipeline_mode = #tpu.pipeline_mode<synchronous>, transform_indices = @transform_5, window_bounds = array<i64: 128, 128>}, {pipeline_mode = #tpu.pipeline_mode<synchronous>, transform_indices = @transform_6, window_bounds = array<i64: 1, 128>}, {transform_indices = @transform_7, window_bounds = array<i64: 8, 2>}]} {
    %c0 = arith.constant 0 : index
    %c0_0 = arith.constant 0 : index
    %0 = vector.load %arg1[%c0, %c0_0] : memref<8x1xf32, #tpu.memory_space<vmem>>, vector<8x1xf32>
    %c0_1 = arith.constant 0 : index
    %c0_2 = arith.constant 0 : index
    %1 = vector.load %arg2[%c0_1, %c0_2] : memref<1x128xf32, #tpu.memory_space<vmem>>, vector<1x128xf32>
    %2 = vector.broadcast %0 : vector<8x1xf32> to vector<8x128xf32>
    %3 = vector.broadcast %1 : vector<1x128xf32> to vector<8x128xf32>
    %4 = arith.mulf %2, %3 : vector<8x128xf32>
    %c0_3 = arith.constant 0 : index
    %c0_4 = arith.constant 0 : index
    %5 = vector.load %arg3[%c0_3, %c0_4] : memref<1x128xf32, #tpu.memory_space<vmem>>, vector<1x128xf32>
    %6 = vector.broadcast %5 : vector<1x128xf32> to vector<8x128xf32>
    %7 = arith.addf %4, %6 : vector<8x128xf32>
    %cst = arith.constant 0.000000e+00 : f32
    %8 = vector.broadcast %cst : f32 to vector<8x128xf32>
    %9 = arith.maximumf %7, %8 : vector<8x128xf32>
    %10 = arith.truncf %9 : vector<8x128xf32> to vector<8x128xbf16>
    %c0_5 = arith.constant 0 : index
    %c0_6 = arith.constant 0 : index
    %11 = vector.load %arg4[%c0_5, %c0_6] : memref<128x128xbf16, #tpu.memory_space<vmem>>, vector<128x128xbf16>
    %cst_7 = arith.constant dense<0.000000e+00> : vector<8x128xf32>
    %12 = tpu.matmul %10, %11, %cst_7 {dimension_numbers = #tpu.dot_dimension_numbers<[1], [0], [0], [1], [0, 0, 1, 1], [], []>} : vector<8x128xbf16>, vector<128x128xbf16>, vector<8x128xf32> -> vector<8x128xf32>
    %c0_8 = arith.constant 0 : index
    %c0_9 = arith.constant 0 : index
    %13 = vector.load %arg5[%c0_8, %c0_9] : memref<1x128xf32, #tpu.memory_space<vmem>>, vector<1x128xf32>
    %14 = vector.broadcast %13 : vector<1x128xf32> to vector<8x128xf32>
    %15 = arith.addf %12, %14 : vector<8x128xf32>
    %cst_10 = arith.constant 0.000000e+00 : f32
    %16 = vector.broadcast %cst_10 : f32 to vector<8x128xf32>
    %17 = arith.maximumf %15, %16 : vector<8x128xf32>
    %18 = arith.truncf %17 : vector<8x128xf32> to vector<8x128xbf16>
    %c0_11 = arith.constant 0 : index
    %c0_12 = arith.constant 0 : index
    %19 = vector.load %arg6[%c0_11, %c0_12] : memref<128x128xbf16, #tpu.memory_space<vmem>>, vector<128x128xbf16>
    %cst_13 = arith.constant dense<0.000000e+00> : vector<8x128xf32>
    %20 = tpu.matmul %18, %19, %cst_13 {dimension_numbers = #tpu.dot_dimension_numbers<[1], [0], [0], [1], [0, 0, 1, 1], [], []>} : vector<8x128xbf16>, vector<128x128xbf16>, vector<8x128xf32> -> vector<8x128xf32>
    %c0_14 = arith.constant 0 : index
    %c0_15 = arith.constant 0 : index
    %21 = vector.load %arg7[%c0_14, %c0_15] : memref<1x128xf32, #tpu.memory_space<vmem>>, vector<1x128xf32>
    %22 = vector.broadcast %21 : vector<1x128xf32> to vector<8x128xf32>
    %23 = arith.addf %20, %22 : vector<8x128xf32>
    %24 = vector.extract_strided_slice %23 {offsets = [0, 0], sizes = [8, 2], strides = [1, 1]} : vector<8x128xf32> to vector<8x2xf32>
    %c0_16 = arith.constant 0 : index
    %c0_17 = arith.constant 0 : index
    %25 = vector.load %arg8[%c0_16, %c0_17] : memref<8x2xf32, #tpu.memory_space<vmem>>, vector<8x2xf32>
    tpu.vector_store %arg8[%c0_16, %c0_17], %24 {strides = array<i32>} : memref<8x2xf32, #tpu.memory_space<vmem>>, vector<8x2xf32>,
    return
  }
  func.func @transform_0(%arg0: i32) -> (i32, i32) {
    %c0_i32 = arith.constant 0 : i32
    %c0_i32_0 = arith.constant 0 : i32
    return %arg0, %c0_i32 : i32, i32
  }
  func.func @transform_1(%arg0: i32) -> (i32, i32) {
    %c0_i32 = arith.constant 0 : i32
    %c0_i32_0 = arith.constant 0 : i32
    %c0_i32_1 = arith.constant 0 : i32
    return %c0_i32, %c0_i32_0 : i32, i32
  }
  func.func @transform_2(%arg0: i32) -> (i32, i32) {
    %c0_i32 = arith.constant 0 : i32
    %c0_i32_0 = arith.constant 0 : i32
    %c0_i32_1 = arith.constant 0 : i32
    return %c0_i32, %c0_i32_0 : i32, i32
  }
  func.func @transform_3(%arg0: i32) -> (i32, i32) {
    %c0_i32 = arith.constant 0 : i32
    %c0_i32_0 = arith.constant 0 : i32
    %c0_i32_1 = arith.constant 0 : i32
    return %c0_i32, %c0_i32_0 : i32, i32
  }
  func.func @transform_4(%arg0: i32) -> (i32, i32) {
    %c0_i32 = arith.constant 0 : i32
    %c0_i32_0 = arith.constant 0 : i32
    %c0_i32_1 = arith.constant 0 : i32
    return %c0_i32, %c0_i32_0 : i32, i32
  }
  func.func @transform_5(%arg0: i32) -> (i32, i32) {
    %c0_i32 = arith.constant 0 : i32
    %c0_i32_0 = arith.constant 0 : i32
    %c0_i32_1 = arith.constant 0 : i32
    return %c0_i32, %c0_i32_0 : i32, i32
  }
  func.func @transform_6(%arg0: i32) -> (i32, i32) {
    %c0_i32 = arith.constant 0 : i32
    %c0_i32_0 = arith.constant 0 : i32
    %c0_i32_1 = arith.constant 0 : i32
    return %c0_i32, %c0_i32_0 : i32, i32
  }
  func.func @transform_7(%arg0: i32) -> (i32, i32) {
    %c0_i32 = arith.constant 0 : i32
    %c0_i32_0 = arith.constant 0 : i32
    return %arg0, %c0_i32 : i32, i32
  }
}

</mosaic_0001>

<llo_original>
// kernel: tpu_custom_call.1
$region0: #{tpu_custom_call.1}
  #allocation0 [shape = 'u32[]', space=smem, size = 0x4, offset = 0x4, fixed_abs, tag = 'smem constant byte address 0x4 - core index']
  #allocation1 [shape = 'u32[144,128]{1,0:T(1,128)}', space=vmem, size = 0x12000, scoped, tag = 'internal scratch']
  %s0 = inlined_call_operand.vmem [shape: f32[8,1], index: 0, kind: input, shape index: {}]
  %s1 = inlined_call_operand.vmem [shape: f32[1,128], index: 1, kind: input, shape index: {}]
  %s2 = inlined_call_operand.vmem [shape: f32[1,128], index: 2, kind: input, shape index: {}]
  %s3 = inlined_call_operand.hbm [shape: bf16[128,128], index: 3, kind: input, shape index: {}]
  %s4 = inlined_call_operand.vmem [shape: f32[1,128], index: 4, kind: input, shape index: {}]
  %s5 = inlined_call_operand.hbm [shape: bf16[128,128], index: 5, kind: input, shape index: {}]
  %s6 = inlined_call_operand.vmem [shape: f32[1,128], index: 6, kind: input, shape index: {}]
  %s7 = inlined_call_operand.vmem [shape: f32[8,2], index: 7, kind: output, shape index: {}]
  %s8 = sld [smem:[#allocation0]]
  $region46: #{tpu_custom_call.1} parent=0
    _
  %s10 = ssub.s32 1, %s8
  %s11 = scalar_select 0, %s10, %s8
  $region1: #{tpu_custom_call.1} parent=0
    #allocation2 [shape = 'u8[32768]{0}', space=vmem, size = 0x8000, scoped, tag = 'input window, operand 3, single buffered']
    #allocation3 [shape = 's32[1]{0}', space=sflag, size = 0x4, scoped, tag = 'scoped memory for tpu_custom_call.1']
    #allocation4 [shape = 'u8[32768]{0}', space=vmem, size = 0x8000, scoped, tag = 'input window, operand 5, single buffered']
    #allocation5 [shape = 's32[1]{0}', space=sflag, size = 0x4, scoped, tag = 'scoped memory for tpu_custom_call.1']
    %12 = vsyncpa [#allocation3], 0
    %13 = vsyncpa [#allocation5], 0
    // Predicated region
    $region2: #{tpu_custom_call.1} parent=1 // pred_check
      _
    $region3: #{tpu_custom_call.1} parent=1 // pred_check_branch
      %15 = sbr.rel (0) target = $region5
    $region4: #{tpu_custom_call.1} parent=1 // pred_region
      _
    $region5: #{tpu_custom_call.1} parent=1 // pred_fallthru
      _
    // Predicated region
    $region6: #{tpu_custom_call.1} parent=1 // pred_check
      _
    $region7: #{tpu_custom_call.1} parent=1 // pred_check_branch
      %17 = sbr.rel (0) target = $region9
    $region8: #{tpu_custom_call.1} parent=1 // pred_region
      _
    $region9: #{tpu_custom_call.1} parent=1 // pred_fallthru
      _
    // Predicated region
    $region10: #{tpu_custom_call.1} parent=1 // pred_check
      _
    $region11: #{tpu_custom_call.1} parent=1 // pred_check_branch
      %19 = sbr.rel (0) target = $region13
    $region12: #{tpu_custom_call.1} parent=1 // pred_region
      _
    $region13: #{tpu_custom_call.1} parent=1 // pred_fallthru
      _
    // Predicated region
    $region14: #{tpu_custom_call.1} parent=1 // pred_check
      _
    $region15: #{tpu_custom_call.1} parent=1 // pred_check_branch
      %21 = sbr.rel (0) target = $region17
    $region16: #{tpu_custom_call.1} parent=1 // pred_region
      %s23 = ssub.s32 1024, 1024
      %24 = vsyncadd [#allocation3], %s23
      %s25 = sshll.u32 [#allocation2], 4
      %s26 = int_to_ptr.vmem [resolvable:$true] %s25
      %31 = dma.hbm_to_vmem [thread:$0]  %s3, 1024, %s26, [#allocation3], 64, 64, 4
    $region17: #{tpu_custom_call.1} parent=1 // pred_fallthru
      _
    // Predicated region
    $region18: #{tpu_custom_call.1} parent=1 // pred_check
      _
    $region19: #{tpu_custom_call.1} parent=1 // pred_check_branch
      %33 = sbr.rel (0) target = $region21
    $region20: #{tpu_custom_call.1} parent=1 // pred_region
      _
    $region21: #{tpu_custom_call.1} parent=1 // pred_fallthru
      _
    // Predicated region
    $region22: #{tpu_custom_call.1} parent=1 // pred_check
      _
    $region23: #{tpu_custom_call.1} parent=1 // pred_check_branch
      %35 = sbr.rel (0) target = $region25
    $region24: #{tpu_custom_call.1} parent=1 // pred_region
      %s37 = ssub.s32 1024, 1024
      %38 = vsyncadd [#allocation5], %s37
      %s39 = sshll.u32 [#allocation4], 4
      %s40 = int_to_ptr.vmem [resolvable:$true] %s39
      %45 = dma.hbm_to_vmem [thread:$0]  %s5, 1024, %s40, [#allocation5], 64, 64, 4
    $region25: #{tpu_custom_call.1} parent=1 // pred_fallthru
      _
    // Predicated region
    $region26: #{tpu_custom_call.1} parent=1 // pred_check
      _
    $region27: #{tpu_custom_call.1} parent=1 // pred_check_branch
      %47 = sbr.rel (0) target = $region29
    $region28: #{tpu_custom_call.1} parent=1 // pred_region
      _
    $region29: #{tpu_custom_call.1} parent=1 // pred_fallthru
      _
    // Predicated region
    $region30: #{tpu_custom_call.1} parent=1 // pred_check
      _
    $region31: #{tpu_custom_call.1} parent=1 // pred_check_branch
      %49 = sbr.rel (0) target = $region33
    $region32: #{tpu_custom_call.1} parent=1 // pred_region
      %50 = dma.done [#allocation3], 1024
    $region33: #{tpu_custom_call.1} parent=1 // pred_fallthru
      _
    // Predicated region
    $region34: #{tpu_custom_call.1} parent=1 // pred_check
      _
    $region35: #{tpu_custom_call.1} parent=1 // pred_check_branch
      %52 = sbr.rel (0) target = $region37
    $region36: #{tpu_custom_call.1} parent=1 // pred_region
      %53 = dma.done [#allocation5], 1024
    $region37: #{tpu_custom_call.1} parent=1 // pred_fallthru
      _
    %v55 = vld [vmem:[%s0] sm:$0xff]
    %v56 = vld [vmem:[%s1] sm:$0x1]
    %58 = vset.pattern.permute.xlu0 0
    %59 = vperm.xlu0 %58, %v55
    %v60 = vpop.permute.xlu0 %59
    %v63 = vlaneseq
    %v64 = vshrl.u32 %v63, 7
    %v65 = vsub.s32 0, %v64
    %v66 = vrot.slane %v56, %v65
    %v68 = vmul.f32 %v60, %v66
    %v69 = vld [vmem:[%s2] sm:$0x1]
    %v71 = vlaneseq
    %v72 = vshrl.u32 %v71, 7
    %v73 = vsub.s32 0, %v72
    %v74 = vrot.slane %v69, %v73
    %v76 = vadd.f32 %v68, %v74
    %v77 = vmax.f32 %v76, 0.0
    %v78 = vpack.c.bf16 %v77, %v77
    %v79 = vld [vmem:[#allocation2] sm:$0xf]
    %v80 = vld [vmem:[#allocation2 + $0x4] sm:$0xf]
    %v81 = vld [vmem:[#allocation2 + $0x8] sm:$0xf]
    %v82 = vld [vmem:[#allocation2 + $0xc] sm:$0xf]
    %v83 = vld [vmem:[#allocation2 + $0x10] sm:$0xf]
    %v84 = vld [vmem:[#allocation2 + $0x14] sm:$0xf]
    %v85 = vld [vmem:[#allocation2 + $0x18] sm:$0xf]
    %v86 = vld [vmem:[#allocation2 + $0x1c] sm:$0xf]
    %v87 = vld [vmem:[#allocation2 + $0x20] sm:$0xf]
    %v88 = vld [vmem:[#allocation2 + $0x24] sm:$0xf]
    %v89 = vld [vmem:[#allocation2 + $0x28] sm:$0xf]
    %v90 = vld [vmem:[#allocation2 + $0x2c] sm:$0xf]
    %v91 = vld [vmem:[#allocation2 + $0x30] sm:$0xf]
    %v92 = vld [vmem:[#allocation2 + $0x34] sm:$0xf]
    %v93 = vld [vmem:[#allocation2 + $0x38] sm:$0xf]
    %v94 = vld [vmem:[#allocation2 + $0x3c] sm:$0xf]
    %v95 = vld [vmem:[%s4] sm:$0x1]
    %v97 = vlaneseq
    %v98 = vshrl.u32 %v97, 7
    %v99 = vsub.s32 0, %v98
    %v100 = vrot.slane %v95, %v99
    %v118 = vunpack.c.l.b16 %v79
    %v119 = vunpack.c.l.b16 %v80
    %v120 = vunpack.c.l.b16 %v81
    %v121 = vunpack.c.l.b16 %v82
    %v122 = vunpack.c.l.b16 %v83
    %v123 = vunpack.c.l.b16 %v84
    %v124 = vunpack.c.l.b16 %v85
    %v125 = vunpack.c.l.b16 %v86
    %v126 = vunpack.c.l.b16 %v87
    %v127 = vunpack.c.l.b16 %v88
    %v128 = vunpack.c.l.b16 %v89
    %v129 = vunpack.c.l.b16 %v90
    %v130 = vunpack.c.l.b16 %v91
    %v131 = vunpack.c.l.b16 %v92
    %v132 = vunpack.c.l.b16 %v93
    %v133 = vunpack.c.l.b16 %v94
    %v134 = vpack.c.b16 %v119, %v118
    %v135 = vpack.c.b16 %v121, %v120
    %v136 = vpack.c.b16 %v123, %v122
    %v137 = vpack.c.b16 %v125, %v124
    %v138 = vpack.c.b16 %v127, %v126
    %v139 = vpack.c.b16 %v129, %v128
    %v140 = vpack.c.b16 %v131, %v130
    %v141 = vpack.c.b16 %v133, %v132
    %150 = vmatprep.subr.bf16.mxu0 0
    %151 = vmatpush1.bf16.msra.mxu0 %v134
    %152 = vmatprep.subr.bf16.mxu0 0
    %153 = vmatpush1.bf16.msra.mxu0 %v135
    %154 = vmatprep.subr.bf16.mxu0 0
    %155 = vmatpush1.bf16.msra.mxu0 %v136
    %156 = vmatprep.subr.bf16.mxu0 0
    %157 = vmatpush1.bf16.msra.mxu0 %v137
    %158 = vmatprep.subr.bf16.mxu0 0
    %159 = vmatpush1.bf16.msra.mxu0 %v138
    %160 = vmatprep.subr.bf16.mxu0 0
    %161 = vmatpush1.bf16.msra.mxu0 %v139
    %162 = vmatprep.subr.bf16.mxu0 0
    %163 = vmatpush1.bf16.msra.mxu0 %v140
    %164 = vmatprep.subr.bf16.mxu0 0
    %165 = vmatpush1.bf16.msra.mxu0 %v141
    %166 = vmatprep.subr.bf16.mxu0 0
    %167 = vmatpush1.bf16.msra.mxu0 0
    %168 = vmatprep.subr.bf16.mxu0 0
    %169 = vmatpush1.bf16.msra.mxu0 0
    %170 = vmatprep.subr.bf16.mxu0 0
    %171 = vmatpush1.bf16.msra.mxu0 0
    %172 = vmatprep.subr.bf16.mxu0 0
    %173 = vmatpush1.bf16.msra.mxu0 0
    %174 = vmatprep.subr.bf16.mxu0 0
    %175 = vmatpush1.bf16.msra.mxu0 0
    %176 = vmatprep.subr.bf16.mxu0 0
    %177 = vmatpush1.bf16.msra.mxu0 0
    %178 = vmatprep.subr.bf16.mxu0 0
    %179 = vmatpush1.bf16.msra.mxu0 0
    %180 = vmatprep.subr.bf16.mxu0 0
    %181 = vmatpush1.bf16.msra.mxu0 0
    %182 = vmatprep.mubr.bf16.mxu0 0
    %183 = vmatmul.mubr.bf16.gmra.mrb[0].mxu0 %v78
    %v184 = vpop.f32.mrb[0].mxu0
    %v185 = vadd.f32 %v100, %v184
    %v186 = vpop.f32.mrb[0].mxu0
    %v187 = vpop.f32.mrb[0].mxu0
    %v188 = vpop.f32.mrb[0].mxu0
    %189 = vdwg.mxu0
    %v190 = vmax.f32 %v185, 0.0
    %v191 = vpack.c.bf16 %v190, %v190
    %v192 = vld [vmem:[#allocation4] sm:$0xf]
    %v193 = vld [vmem:[#allocation4 + $0x4] sm:$0xf]
    %v194 = vld [vmem:[#allocation4 + $0x8] sm:$0xf]
    %v195 = vld [vmem:[#allocation4 + $0xc] sm:$0xf]
    %v196 = vld [vmem:[#allocation4 + $0x10] sm:$0xf]
    %v197 = vld [vmem:[#allocation4 + $0x14] sm:$0xf]
    %v198 = vld [vmem:[#allocation4 + $0x18] sm:$0xf]
    %v199 = vld [vmem:[#allocation4 + $0x1c] sm:$0xf]
    %v200 = vld [vmem:[#allocation4 + $0x20] sm:$0xf]
    %v201 = vld [vmem:[#allocation4 + $0x24] sm:$0xf]
    %v202 = vld [vmem:[#allocation4 + $0x28] sm:$0xf]
    %v203 = vld [vmem:[#allocation4 + $0x2c] sm:$0xf]
    %v204 = vld [vmem:[#allocation4 + $0x30] sm:$0xf]
    %v205 = vld [vmem:[#allocation4 + $0x34] sm:$0xf]
    %v206 = vld [vmem:[#allocation4 + $0x38] sm:$0xf]
    %v207 = vld [vmem:[#allocation4 + $0x3c] sm:$0xf]
    %v208 = vld [vmem:[%s6] sm:$0x1]
    %v210 = vlaneseq
    %v211 = vshrl.u32 %v210, 7
    %v212 = vsub.s32 0, %v211
    %v213 = vrot.slane %v208, %v212
    %v231 = vunpack.c.l.b16 %v192
    %v232 = vunpack.c.l.b16 %v193
    %v233 = vunpack.c.l.b16 %v194
    %v234 = vunpack.c.l.b16 %v195
    %v235 = vunpack.c.l.b16 %v196
    %v236 = vunpack.c.l.b16 %v197
    %v237 = vunpack.c.l.b16 %v198
    %v238 = vunpack.c.l.b16 %v199
    %v239 = vunpack.c.l.b16 %v200
    %v240 = vunpack.c.l.b16 %v201
    %v241 = vunpack.c.l.b16 %v202
    %v242 = vunpack.c.l.b16 %v203
    %v243 = vunpack.c.l.b16 %v204
    %v244 = vunpack.c.l.b16 %v205
    %v245 = vunpack.c.l.b16 %v206
    %v246 = vunpack.c.l.b16 %v207
    %v247 = vpack.c.b16 %v232, %v231
    %v248 = vpack.c.b16 %v234, %v233
    %v249 = vpack.c.b16 %v236, %v235
    %v250 = vpack.c.b16 %v238, %v237
    %v251 = vpack.c.b16 %v240, %v239
    %v252 = vpack.c.b16 %v242, %v241
    %v253 = vpack.c.b16 %v244, %v243
    %v254 = vpack.c.b16 %v246, %v245
    %263 = vmatprep.subr.bf16.mxu0 0
    %264 = vmatpush1.bf16.msra.mxu0 %v247
    %265 = vmatprep.subr.bf16.mxu0 0
    %266 = vmatpush1.bf16.msra.mxu0 %v248
    %267 = vmatprep.subr.bf16.mxu0 0
    %268 = vmatpush1.bf16.msra.mxu0 %v249
    %269 = vmatprep.subr.bf16.mxu0 0
    %270 = vmatpush1.bf16.msra.mxu0 %v250
    %271 = vmatprep.subr.bf16.mxu0 0
    %272 = vmatpush1.bf16.msra.mxu0 %v251
    %273 = vmatprep.subr.bf16.mxu0 0
    %274 = vmatpush1.bf16.msra.mxu0 %v252
    %275 = vmatprep.subr.bf16.mxu0 0
    %276 = vmatpush1.bf16.msra.mxu0 %v253
    %277 = vmatprep.subr.bf16.mxu0 0
    %278 = vmatpush1.bf16.msra.mxu0 %v254
    %279 = vmatprep.subr.bf16.mxu0 0
    %280 = vmatpush1.bf16.msra.mxu0 0
    %281 = vmatprep.subr.bf16.mxu0 0
    %282 = vmatpush1.bf16.msra.mxu0 0
    %283 = vmatprep.subr.bf16.mxu0 0
    %284 = vmatpush1.bf16.msra.mxu0 0
    %285 = vmatprep.subr.bf16.mxu0 0
    %286 = vmatpush1.bf16.msra.mxu0 0
    %287 = vmatprep.subr.bf16.mxu0 0
    %288 = vmatpush1.bf16.msra.mxu0 0
    %289 = vmatprep.subr.bf16.mxu0 0
    %290 = vmatpush1.bf16.msra.mxu0 0
    %291 = vmatprep.subr.bf16.mxu0 0
    %292 = vmatpush1.bf16.msra.mxu0 0
    %293 = vmatprep.subr.bf16.mxu0 0
    %294 = vmatpush1.bf16.msra.mxu0 0
    %295 = vmatprep.mubr.bf16.mxu0 0
    %296 = vmatmul.mubr.bf16.gmra.mrb[0].mxu0 %v191
    %v297 = vpop.f32.mrb[0].mxu0
    %v298 = vadd.f32 %v213, %v297
    %v299 = vpop.f32.mrb[0].mxu0
    %v300 = vpop.f32.mrb[0].mxu0
    %v301 = vpop.f32.mrb[0].mxu0
    %302 = vdwg.mxu0
    %vm303 = vcmask 15360
    %304 = vst.msk [vmem:[%s7] sm:$0xff] %vm303, %v298
    // Predicated region
    $region38: #{tpu_custom_call.1} parent=1 // pred_check
      _
    $region39: #{tpu_custom_call.1} parent=1 // pred_check_branch
      %306 = sbr.rel (0) target = $region41
    $region40: #{tpu_custom_call.1} parent=1 // pred_region
      _
    $region41: #{tpu_custom_call.1} parent=1 // pred_fallthru
      _
    // Predicated region
    $region42: #{tpu_custom_call.1} parent=1 // pred_check
      _
    $region43: #{tpu_custom_call.1} parent=1 // pred_check_branch
      %308 = sbr.rel (0) target = $region45
    $region44: #{tpu_custom_call.1} parent=1 // pred_region
      _
    $region45: #{tpu_custom_call.1} parent=1 // pred_fallthru
      _
    %309 = vsyncpa [#allocation3], 1
    %310 = vsyncpa [#allocation5], 1

</llo_original>
